<compile_context>
chip_gen: v7x
topology: tpu7x:2x2x1
jax: 0.10.0
libtpu: 0.0.40
codegen_flags: <defaults>
</compile_context>

<pallas_src>
import math
import numpy as np
import jax
import jax.numpy as jnp
from jax.experimental import pallas as pl
from jax.experimental.pallas import tpu as pltpu


def _round_up(x, m):
    return ((x + m - 1) // m) * m


# ---------------------------------------------------------------------------
# Kernel: one MXU matmul per N-tile.
#   x_ref : (block_n, KF)  bf16      w_ref : (KF, NF)  bf16 (resident, const index)
#   b_ref : (1, NF)        f32       o_ref : (block_n, NF) f32
# ---------------------------------------------------------------------------
def semch_fused_kernel(x_ref, w_ref, b_ref, o_ref):
    acc = jnp.dot(x_ref[...], w_ref[...], preferred_element_type=jnp.float32)
    o_ref[...] = (acc + b_ref[...]).astype(o_ref.dtype)


def build_fused_params(W, adj_np, e, bias, *, compute_dtype=jnp.bfloat16):
    """Build the fused weight and tiled bias.

    This is batch-independent glue (mirrors the PyTorch forward's adj/softmax math);
    in a real model it should be computed once per weight update and cached, not per
    forward call.

    W      : (2, Fin, Fout)
    adj_np : (J, J) numpy adjacency (static)
    e      : (Fout, nnz) learnable edge weights
    bias   : (Fout,) or None
    Returns (Wcomb[KF_pad, NF_pad] in compute_dtype, bias_t[1, NF_pad] f32).
    """
    Fin, Fout = W.shape[1], W.shape[2]
    J = adj_np.shape[0]
    if bias is None:
        bias = jnp.zeros((Fout,), dtype=jnp.float32)

    mask = adj_np > 0
    rows, cols = np.nonzero(mask)                        # row-major, like torch nonzero
    A = jnp.full((Fout, J, J), -9000000000000000.0, dtype=jnp.float32)
    A = A.at[:, rows, cols].set(e.astype(jnp.float32))   # adj[self.m] = self.e.view(-1)
    A = jax.nn.softmax(A, axis=2)                        # (Fout, J, J)

    eye = jnp.eye(J, dtype=jnp.float32)
    diag = jnp.transpose(jnp.diagonal(A, axis1=1, axis2=2))       # (J, Fout)
    offd = jnp.transpose(A * (1.0 - eye)[None], (1, 2, 0))        # (J, J, Fout)

    w0 = W[0].astype(jnp.float32)                        # (Fin, Fout)
    w1 = W[1].astype(jnp.float32)

    # Wcomb[k, f, j, c] = delta(k==j)*diag[j,c]*W0[f,c] + offd[j,k,c]*W1[f,c]
    Wcomb = (jnp.einsum('jc,fc,jk->kfjc', diag, w0, eye)
             + jnp.einsum('jkc,fc->kfjc', offd, w1))
    Wcomb = Wcomb.reshape(J * Fin, J * Fout)

    bias_t = jnp.tile(bias.astype(jnp.float32), J).reshape(1, J * Fout)

    # Zero-pad K/N dims to multiples of 128 so everything stays lane-dense even for
    # awkward J (no-op for J=16, Fin=16, Fout=32).  Zero rows/cols are free.
    KF, NF = J * Fin, J * Fout
    KF_pad, NF_pad = _round_up(KF, 128), _round_up(NF, 128)
    if KF_pad != KF or NF_pad != NF:
        Wcomb = jnp.pad(Wcomb, ((0, KF_pad - KF), (0, NF_pad - NF)))
        bias_t = jnp.pad(bias_t, ((0, 0), (0, NF_pad - NF)))

    return Wcomb.astype(compute_dtype), bias_t


def sem_ch_graph_conv_apply(x, Wcomb, bias_t, *, out_features, block_n=1024,
                            compute_dtype=jnp.bfloat16):
    """Apply the fused layer: (B, T, J, Fin) -> (B, T, J, Fout)."""
    B, T, J, Fin = x.shape
    Fout = out_features
    KF, NF = J * Fin, J * Fout
    KF_pad, NF_pad = Wcomb.shape
    N = B * T

    # bf16 activations: halves the x HBM stream and feeds the MXU at native rate.
    x_flat = x.reshape(N, KF).astype(compute_dtype)
    if KF_pad != KF:
        x_flat = jnp.pad(x_flat, ((0, 0), (0, KF_pad - KF)))

    # ---- N tiling: multiple of 16 (bf16 sublane packing), no host-side row padding.
    # Pallas masks the ragged last block; rows are independent so padded garbage rows
    # only feed output rows that are never written back.
    block_n = max(16, _round_up(block_n, 16))
    block_n = min(block_n, _round_up(N, 16))
    if N >= 32:
        # Guarantee >= 2 grid steps so the "parallel" axis shards across both
        # TensorCores on v7x (no effect on v5e/v6e single-TC chips).
        block_n = min(block_n, _round_up((N + 1) // 2, 16))
    n_blocks = pl.cdiv(N, block_n)

    out_flat = pl.pallas_call(
        semch_fused_kernel,
        out_shape=jax.ShapeDtypeStruct((N, NF_pad), x.dtype),
        grid=(n_blocks,),
        in_specs=[
            pl.BlockSpec((block_n, KF_pad), lambda i: (i, 0)),
            # Constant block index: weight stays resident in VMEM across grid steps.
            # TODO(synk): for much larger Fin/Fout/J on v7x, single-buffer this spec
            # (pipeline_mode=pl.Buffered(1)) to halve its VMEM footprint.
            pl.BlockSpec((KF_pad, NF_pad), lambda i: (0, 0)),
            pl.BlockSpec((1, NF_pad), lambda i: (0, 0)),
        ],
        out_specs=pl.BlockSpec((block_n, NF_pad), lambda i: (i, 0)),
        compiler_params=pltpu.CompilerParams(
            dimension_semantics=("parallel",),
            vmem_limit_bytes=32 * 1024 * 1024,
        ),
    )(x_flat, Wcomb, bias_t)

    if NF_pad != NF:
        out_flat = out_flat[:, :NF]
    return out_flat.reshape(B, T, J, Fout)


def sem_ch_graph_conv(x, W, adj_np, e, bias, *, block_n=1024,
                      compute_dtype=jnp.bfloat16):
    """Convenience wrapper: build fused params (cacheable) + apply the kernel."""
    Wcomb, bias_t = build_fused_params(W, adj_np, e, bias, compute_dtype=compute_dtype)
    return sem_ch_graph_conv_apply(x, Wcomb, bias_t, out_features=W.shape[2],
                                   block_n=block_n, compute_dtype=compute_dtype)


def reference_forward(x, W, adj_np, e, bias):
    """Pure-JAX transcription of the PyTorch forward, for verification."""
    B, T, J, Fin = x.shape
    Fout = W.shape[2]
    h0 = jnp.matmul(x, W[0])                   # (B,T,J,Fout)
    h1 = jnp.matmul(x, W[1])
    mask = adj_np > 0
    rows, cols = np.nonzero(mask)
    A = jnp.full((Fout, J, J), -9000000000000000.0, dtype=jnp.float32)
    A = A.at[:, rows, cols].set(e)
    A = jax.nn.softmax(A, axis=2)
    E = jnp.eye(J, dtype=jnp.float32)[None]
    out = (jnp.einsum('cjk,btkc->btjc', A * E, h0)
           + jnp.einsum('cjk,btkc->btjc', A * (1.0 - E), h1))
    return out + bias[None, None, None, :]


if __name__ == "__main__":
    # Small deterministic config.
    B, T, J = 2, 4, 16          # batch, frames, joints
    Fin, Fout = 16, 32          # in_features, out_features

    # Deterministic chain-graph adjacency with self loops (|i - j| <= 1).
    idx = np.arange(J)
    adj_np = (np.abs(idx[:, None] - idx[None, :]) <= 1).astype(np.float32)
    nnz = int((adj_np > 0).sum())

    key = jax.random.PRNGKey(0)
    kw, kb, kx = jax.random.split(key, 3)

    # W: xavier_uniform(gain=1.414) on shape (2, Fin, Fout)
    gain = 1.414
    fan_in, fan_out = Fin * Fout, 2 * Fout
    a = gain * math.sqrt(6.0 / (fan_in + fan_out))
    W = jax.random.uniform(kw, (2, Fin, Fout), jnp.float32, minval=-a, maxval=a)

    # e: constant 1 init, shape (Fout, nnz)
    e = jnp.ones((Fout, nnz), dtype=jnp.float32)

    # bias: uniform(-stdv, stdv), stdv = 1/sqrt(in_features)
    stdv = 1.0 / math.sqrt(Fin)
    bias = jax.random.uniform(kb, (Fout,), jnp.float32, minval=-stdv, maxval=stdv)

    # Input
    x = jax.random.normal(kx, (B, T, J, Fin), dtype=jnp.float32)

    out = sem_ch_graph_conv(x, W, adj_np, e, bias)
    out = jax.block_until_ready(out)

    ref = jax.block_until_ready(reference_forward(x, W, adj_np, e, bias))
    assert out.shape == (B, T, J, Fout)
    # Tolerance accounts for the intentional bf16 storage of x/Wcomb (f32 MXU
    # accumulation); structural bugs would be orders of magnitude larger.
    np.testing.assert_allclose(np.asarray(out), np.asarray(ref), rtol=1e-2, atol=1e-2)

    print("KERNEL_OK")
</pallas_src>

<mosaic_0001>
module attributes {stable_mosaic.version = 11 : i64} {
  func.func @semch_fused_kernel(%arg0: i32, %arg1: memref<16x256xbf16, #tpu.memory_space<vmem>>, %arg2: memref<256x512xbf16, #tpu.memory_space<vmem>>, %arg3: memref<1x512xf32, #tpu.memory_space<vmem>>, %arg4: memref<16x512xf32, #tpu.memory_space<vmem>>) attributes {dimension_semantics = [#tpu.dimension_semantics<parallel>], iteration_bounds = array<i64: 1>, scalar_prefetch = 0 : i64, scratch_operands = 0 : i64, tpu.core_type = #tpu.core_type<tc>, window_params = [{transform_indices = @transform_0, window_bounds = array<i64: 16, 256>}, {pipeline_mode = #tpu.pipeline_mode<synchronous>, transform_indices = @transform_1, window_bounds = array<i64: 256, 512>}, {pipeline_mode = #tpu.pipeline_mode<synchronous>, transform_indices = @transform_2, window_bounds = array<i64: 1, 512>}, {transform_indices = @transform_3, window_bounds = array<i64: 16, 512>}]} {
    %c0 = arith.constant 0 : index
    %c0_0 = arith.constant 0 : index
    %0 = vector.load %arg1[%c0, %c0_0] : memref<16x256xbf16, #tpu.memory_space<vmem>>, vector<16x256xbf16>
    %c0_1 = arith.constant 0 : index
    %c0_2 = arith.constant 0 : index
    %1 = vector.load %arg2[%c0_1, %c0_2] : memref<256x512xbf16, #tpu.memory_space<vmem>>, vector<256x512xbf16>
    %cst = arith.constant dense<0.000000e+00> : vector<16x512xf32>
    %2 = tpu.matmul %0, %1, %cst {dimension_numbers = #tpu.dot_dimension_numbers<[1], [0], [0], [1], [0, 0, 1, 1], [], []>} : vector<16x256xbf16>, vector<256x512xbf16>, vector<16x512xf32> -> vector<16x512xf32>
    %c0_3 = arith.constant 0 : index
    %c0_4 = arith.constant 0 : index
    %3 = vector.load %arg3[%c0_3, %c0_4] : memref<1x512xf32, #tpu.memory_space<vmem>>, vector<1x512xf32>
    %4 = vector.broadcast %3 : vector<1x512xf32> to vector<16x512xf32>
    %5 = arith.addf %2, %4 : vector<16x512xf32>
    %c0_5 = arith.constant 0 : index
    %c0_6 = arith.constant 0 : index
    %6 = vector.load %arg4[%c0_5, %c0_6] : memref<16x512xf32, #tpu.memory_space<vmem>>, vector<16x512xf32>
    tpu.vector_store %arg4[%c0_5, %c0_6], %5 {strides = array<i32>} : memref<16x512xf32, #tpu.memory_space<vmem>>, vector<16x512xf32>,
    return
  }
  func.func @transform_0(%arg0: i32) -> (i32, i32) {
    %c0_i32 = arith.constant 0 : i32
    %c0_i32_0 = arith.constant 0 : i32
    return %arg0, %c0_i32 : i32, i32
  }
  func.func @transform_1(%arg0: i32) -> (i32, i32) {
    %c0_i32 = arith.constant 0 : i32
    %c0_i32_0 = arith.constant 0 : i32
    %c0_i32_1 = arith.constant 0 : i32
    return %c0_i32, %c0_i32_0 : i32, i32
  }
  func.func @transform_2(%arg0: i32) -> (i32, i32) {
    %c0_i32 = arith.constant 0 : i32
    %c0_i32_0 = arith.constant 0 : i32
    %c0_i32_1 = arith.constant 0 : i32
    return %c0_i32, %c0_i32_0 : i32, i32
  }
  func.func @transform_3(%arg0: i32) -> (i32, i32) {
    %c0_i32 = arith.constant 0 : i32
    %c0_i32_0 = arith.constant 0 : i32
    return %arg0, %c0_i32 : i32, i32
  }
}

</mosaic_0001>

<llo_original>
// kernel: tpu_custom_call.1
$region0: #{tpu_custom_call.1}
  #allocation0 [shape = 'u32[]', space=smem, size = 0x4, offset = 0x4, fixed_abs, tag = 'smem constant byte address 0x4 - core index']
  #allocation1 [shape = 'u32[144,128]{1,0:T(1,128)}', space=vmem, size = 0x12000, scoped, tag = 'internal scratch']
  %s0 = inlined_call_operand.hbm [shape: bf16[8,256], index: 0, kind: input, shape index: {}]
  %s1 = inlined_call_operand.hbm [shape: bf16[256,512], index: 1, kind: input, shape index: {}]
  %s2 = inlined_call_operand.vmem [shape: f32[1,512], index: 2, kind: input, shape index: {}]
  %s3 = inlined_call_operand.hbm [shape: f32[8,512], index: 3, kind: output, shape index: {}]
  %s4 = sld [smem:[#allocation0]]
  $region30: #{tpu_custom_call.1} parent=0
    _
  %s6 = ssub.s32 1, %s4
  %s7 = scalar_select 0, %s6, %s4
  $region1: #{tpu_custom_call.1} parent=0
    #allocation2 [shape = 'u8[8192]{0}', space=vmem, size = 0x2000, scoped, tag = 'input window, operand 0, single buffered']
    #allocation3 [shape = 's32[1]{0}', space=sflag, size = 0x4, scoped, tag = 'scoped memory for tpu_custom_call.1']
    #allocation4 [shape = 's32[1]{0}', space=sflag, size = 0x4, scoped, tag = 'scoped memory for tpu_custom_call.1']
    #allocation5 [shape = 'u8[262144]{0}', space=vmem, size = 0x40000, scoped, tag = 'input window, operand 1, single buffered']
    #allocation6 [shape = 's32[1]{0}', space=sflag, size = 0x4, scoped, tag = 'scoped memory for tpu_custom_call.1']
    #allocation7 [shape = 'u8[32768]{0}', space=vmem, size = 0x8000, scoped, tag = 'output window, operand 0, single buffered']
    %8 = vsyncpa [#allocation3], 0
    %9 = vsyncpa [#allocation6], 0
    %10 = vsyncpa [#allocation4], 0
    // Predicated region
    $region2: #{tpu_custom_call.1} parent=1 // pred_check
      _
    $region3: #{tpu_custom_call.1} parent=1 // pred_check_branch
      %12 = sbr.rel (0) target = $region5
    $region4: #{tpu_custom_call.1} parent=1 // pred_region
      %s14 = ssub.s32 256, 128
      %15 = vsyncadd [#allocation3], %s14
      %s16 = sshll.u32 [#allocation2], 4
      %s17 = int_to_ptr.vmem [resolvable:$true] %s16
      %22 = dma.hbm_to_vmem [thread:$0]  %s0, 128, %s17, [#allocation3], 128, 128, 8
    $region5: #{tpu_custom_call.1} parent=1 // pred_fallthru
      _
    // Predicated region
    $region6: #{tpu_custom_call.1} parent=1 // pred_check
      _
    $region7: #{tpu_custom_call.1} parent=1 // pred_check_branch
      %24 = sbr.rel (0) target = $region9
    $region8: #{tpu_custom_call.1} parent=1 // pred_region
      %s26 = ssub.s32 8192, 8192
      %27 = vsyncadd [#allocation6], %s26
      %s28 = sshll.u32 [#allocation5], 4
      %s29 = int_to_ptr.vmem [resolvable:$true] %s28
      %34 = dma.hbm_to_vmem [thread:$0]  %s1, 8192, %s29, [#allocation6], 256, 256, 16
    $region9: #{tpu_custom_call.1} parent=1 // pred_fallthru
      _
    // Predicated region
    $region10: #{tpu_custom_call.1} parent=1 // pred_check
      _
    $region11: #{tpu_custom_call.1} parent=1 // pred_check_branch
      %36 = sbr.rel (0) target = $region13
    $region12: #{tpu_custom_call.1} parent=1 // pred_region
      _
    $region13: #{tpu_custom_call.1} parent=1 // pred_fallthru
      _
    // Predicated region
    $region14: #{tpu_custom_call.1} parent=1 // pred_check
      _
    $region15: #{tpu_custom_call.1} parent=1 // pred_check_branch
      %38 = sbr.rel (0) target = $region17
    $region16: #{tpu_custom_call.1} parent=1 // pred_region
      %39 = dma.done [#allocation3], 256
    $region17: #{tpu_custom_call.1} parent=1 // pred_fallthru
      _
    // Predicated region
    $region18: #{tpu_custom_call.1} parent=1 // pred_check
      _
    $region19: #{tpu_custom_call.1} parent=1 // pred_check_branch
      %41 = sbr.rel (0) target = $region21
    $region20: #{tpu_custom_call.1} parent=1 // pred_region
      %42 = dma.done [#allocation6], 8192
    $region21: #{tpu_custom_call.1} parent=1 // pred_fallthru
      _
    %v43 = vld [vmem:[#allocation2] sm:$0xff]
    %v44 = vld [vmem:[#allocation2 + $0x8] sm:$0xff]
    %v45 = vld [vmem:[#allocation5] sm:$0xff]
    %v46 = vld [vmem:[#allocation5 + $0x8] sm:$0xff]
    %v47 = vld [vmem:[#allocation5 + $0x10] sm:$0xff]
    %v48 = vld [vmem:[#allocation5 + $0x18] sm:$0xff]
    %v49 = vld [vmem:[#allocation5 + $0x20] sm:$0xff]
    %v50 = vld [vmem:[#allocation5 + $0x28] sm:$0xff]
    %v51 = vld [vmem:[#allocation5 + $0x30] sm:$0xff]
    %v52 = vld [vmem:[#allocation5 + $0x38] sm:$0xff]
    %v53 = vld [vmem:[#allocation5 + $0x40] sm:$0xff]
    %v54 = vld [vmem:[#allocation5 + $0x48] sm:$0xff]
    %v55 = vld [vmem:[#allocation5 + $0x50] sm:$0xff]
    %v56 = vld [vmem:[#allocation5 + $0x58] sm:$0xff]
    %v57 = vld [vmem:[#allocation5 + $0x60] sm:$0xff]
    %v58 = vld [vmem:[#allocation5 + $0x68] sm:$0xff]
    %v59 = vld [vmem:[#allocation5 + $0x70] sm:$0xff]
    %v60 = vld [vmem:[#allocation5 + $0x78] sm:$0xff]
    %v61 = vld [vmem:[#allocation5 + $0x80] sm:$0xff]
    %v62 = vld [vmem:[#allocation5 + $0x88] sm:$0xff]
    %v63 = vld [vmem:[#allocation5 + $0x90] sm:$0xff]
    %v64 = vld [vmem:[#allocation5 + $0x98] sm:$0xff]
    %v65 = vld [vmem:[#allocation5 + $0xa0] sm:$0xff]
    %v66 = vld [vmem:[#allocation5 + $0xa8] sm:$0xff]
    %v67 = vld [vmem:[#allocation5 + $0xb0] sm:$0xff]
    %v68 = vld [vmem:[#allocation5 + $0xb8] sm:$0xff]
    %v69 = vld [vmem:[#allocation5 + $0xc0] sm:$0xff]
    %v70 = vld [vmem:[#allocation5 + $0xc8] sm:$0xff]
    %v71 = vld [vmem:[#allocation5 + $0xd0] sm:$0xff]
    %v72 = vld [vmem:[#allocation5 + $0xd8] sm:$0xff]
    %v73 = vld [vmem:[#allocation5 + $0xe0] sm:$0xff]
    %v74 = vld [vmem:[#allocation5 + $0xe8] sm:$0xff]
    %v75 = vld [vmem:[#allocation5 + $0xf0] sm:$0xff]
    %v76 = vld [vmem:[#allocation5 + $0xf8] sm:$0xff]
    %v77 = vld [vmem:[#allocation5 + $0x100] sm:$0xff]
    %v78 = vld [vmem:[#allocation5 + $0x108] sm:$0xff]
    %v79 = vld [vmem:[#allocation5 + $0x110] sm:$0xff]
    %v80 = vld [vmem:[#allocation5 + $0x118] sm:$0xff]
    %v81 = vld [vmem:[#allocation5 + $0x120] sm:$0xff]
    %v82 = vld [vmem:[#allocation5 + $0x128] sm:$0xff]
    %v83 = vld [vmem:[#allocation5 + $0x130] sm:$0xff]
    %v84 = vld [vmem:[#allocation5 + $0x138] sm:$0xff]
    %v85 = vld [vmem:[#allocation5 + $0x140] sm:$0xff]
    %v86 = vld [vmem:[#allocation5 + $0x148] sm:$0xff]
    %v87 = vld [vmem:[#allocation5 + $0x150] sm:$0xff]
    %v88 = vld [vmem:[#allocation5 + $0x158] sm:$0xff]
    %v89 = vld [vmem:[#allocation5 + $0x160] sm:$0xff]
    %v90 = vld [vmem:[#allocation5 + $0x168] sm:$0xff]
    %v91 = vld [vmem:[#allocation5 + $0x170] sm:$0xff]
    %v92 = vld [vmem:[#allocation5 + $0x178] sm:$0xff]
    %v93 = vld [vmem:[#allocation5 + $0x180] sm:$0xff]
    %v94 = vld [vmem:[#allocation5 + $0x188] sm:$0xff]
    %v95 = vld [vmem:[#allocation5 + $0x190] sm:$0xff]
    %v96 = vld [vmem:[#allocation5 + $0x198] sm:$0xff]
    %v97 = vld [vmem:[#allocation5 + $0x1a0] sm:$0xff]
    %v98 = vld [vmem:[#allocation5 + $0x1a8] sm:$0xff]
    %v99 = vld [vmem:[#allocation5 + $0x1b0] sm:$0xff]
    %v100 = vld [vmem:[#allocation5 + $0x1b8] sm:$0xff]
    %v101 = vld [vmem:[#allocation5 + $0x1c0] sm:$0xff]
    %v102 = vld [vmem:[#allocation5 + $0x1c8] sm:$0xff]
    %v103 = vld [vmem:[#allocation5 + $0x1d0] sm:$0xff]
    %v104 = vld [vmem:[#allocation5 + $0x1d8] sm:$0xff]
    %v105 = vld [vmem:[#allocation5 + $0x1e0] sm:$0xff]
    %v106 = vld [vmem:[#allocation5 + $0x1e8] sm:$0xff]
    %v107 = vld [vmem:[#allocation5 + $0x1f0] sm:$0xff]
    %v108 = vld [vmem:[#allocation5 + $0x1f8] sm:$0xff]
    %v109 = vld [vmem:[%s2] sm:$0xf]
    %v111 = vlaneseq
    %v112 = vshrl.u32 %v111, 7
    %v113 = vsub.s32 0, %v112
    %v114 = vrot.slane %v109, %v113
    %v115 = vlaneseq
    %v116 = vshrl.u32 %v115, 7
    %v117 = vsub.s32 1, %v116
    %v118 = vrot.slane %v109, %v117
    %v119 = vlaneseq
    %v120 = vshrl.u32 %v119, 7
    %v121 = vsub.s32 2, %v120
    %v122 = vrot.slane %v109, %v121
    %v123 = vlaneseq
    %v124 = vshrl.u32 %v123, 7
    %v125 = vsub.s32 3, %v124
    %v126 = vrot.slane %v109, %v125
    %v133 = vunpack.c.l.b16 %v43
    %v134 = vunpack.c.h.b16 %v43
    %v135 = vunpack.c.l.b16 %v44
    %v136 = vunpack.c.h.b16 %v44
    %v137 = vpack.c.b16 %v135, %v133
    %v138 = vpack.c.b16 %v136, %v134
    %v205 = vunpack.c.l.b16 %v45
    %v206 = vunpack.c.h.b16 %v45
    %v207 = vunpack.c.l.b16 %v46
    %v208 = vunpack.c.h.b16 %v46
    %v209 = vunpack.c.l.b16 %v47
    %v210 = vunpack.c.h.b16 %v47
    %v211 = vunpack.c.l.b16 %v48
    %v212 = vunpack.c.h.b16 %v48
    %v213 = vunpack.c.l.b16 %v49
    %v214 = vunpack.c.h.b16 %v49
    %v215 = vunpack.c.l.b16 %v50
    %v216 = vunpack.c.h.b16 %v50
    %v217 = vunpack.c.l.b16 %v51
    %v218 = vunpack.c.h.b16 %v51
    %v219 = vunpack.c.l.b16 %v52
    %v220 = vunpack.c.h.b16 %v52
    %v221 = vunpack.c.l.b16 %v53
    %v222 = vunpack.c.h.b16 %v53
    %v223 = vunpack.c.l.b16 %v54
    %v224 = vunpack.c.h.b16 %v54
    %v225 = vunpack.c.l.b16 %v55
    %v226 = vunpack.c.h.b16 %v55
    %v227 = vunpack.c.l.b16 %v56
    %v228 = vunpack.c.h.b16 %v56
    %v229 = vunpack.c.l.b16 %v57
    %v230 = vunpack.c.h.b16 %v57
    %v231 = vunpack.c.l.b16 %v58
    %v232 = vunpack.c.h.b16 %v58
    %v233 = vunpack.c.l.b16 %v59
    %v234 = vunpack.c.h.b16 %v59
    %v235 = vunpack.c.l.b16 %v60
    %v236 = vunpack.c.h.b16 %v60
    %v237 = vunpack.c.l.b16 %v61
    %v238 = vunpack.c.h.b16 %v61
    %v239 = vunpack.c.l.b16 %v62
    %v240 = vunpack.c.h.b16 %v62
    %v241 = vunpack.c.l.b16 %v63
    %v242 = vunpack.c.h.b16 %v63
    %v243 = vunpack.c.l.b16 %v64
    %v244 = vunpack.c.h.b16 %v64
    %v245 = vunpack.c.l.b16 %v65
    %v246 = vunpack.c.h.b16 %v65
    %v247 = vunpack.c.l.b16 %v66
    %v248 = vunpack.c.h.b16 %v66
    %v249 = vunpack.c.l.b16 %v67
    %v250 = vunpack.c.h.b16 %v67
    %v251 = vunpack.c.l.b16 %v68
    %v252 = vunpack.c.h.b16 %v68
    %v253 = vunpack.c.l.b16 %v69
    %v254 = vunpack.c.h.b16 %v69
    %v255 = vunpack.c.l.b16 %v70
    %v256 = vunpack.c.h.b16 %v70
    %v257 = vunpack.c.l.b16 %v71
    %v258 = vunpack.c.h.b16 %v71
    %v259 = vunpack.c.l.b16 %v72
    %v260 = vunpack.c.h.b16 %v72
    %v261 = vunpack.c.l.b16 %v73
    %v262 = vunpack.c.h.b16 %v73
    %v263 = vunpack.c.l.b16 %v74
    %v264 = vunpack.c.h.b16 %v74
    %v265 = vunpack.c.l.b16 %v75
    %v266 = vunpack.c.h.b16 %v75
    %v267 = vunpack.c.l.b16 %v76
    %v268 = vunpack.c.h.b16 %v76
    %v269 = vunpack.c.l.b16 %v77
    %v270 = vunpack.c.h.b16 %v77
    %v271 = vunpack.c.l.b16 %v78
    %v272 = vunpack.c.h.b16 %v78
    %v273 = vunpack.c.l.b16 %v79
    %v274 = vunpack.c.h.b16 %v79
    %v275 = vunpack.c.l.b16 %v80
    %v276 = vunpack.c.h.b16 %v80
    %v277 = vunpack.c.l.b16 %v81
    %v278 = vunpack.c.h.b16 %v81
    %v279 = vunpack.c.l.b16 %v82
    %v280 = vunpack.c.h.b16 %v82
    %v281 = vunpack.c.l.b16 %v83
    %v282 = vunpack.c.h.b16 %v83
    %v283 = vunpack.c.l.b16 %v84
    %v284 = vunpack.c.h.b16 %v84
    %v285 = vunpack.c.l.b16 %v85
    %v286 = vunpack.c.h.b16 %v85
    %v287 = vunpack.c.l.b16 %v86
    %v288 = vunpack.c.h.b16 %v86
    %v289 = vunpack.c.l.b16 %v87
    %v290 = vunpack.c.h.b16 %v87
    %v291 = vunpack.c.l.b16 %v88
    %v292 = vunpack.c.h.b16 %v88
    %v293 = vunpack.c.l.b16 %v89
    %v294 = vunpack.c.h.b16 %v89
    %v295 = vunpack.c.l.b16 %v90
    %v296 = vunpack.c.h.b16 %v90
    %v297 = vunpack.c.l.b16 %v91
    %v298 = vunpack.c.h.b16 %v91
    %v299 = vunpack.c.l.b16 %v92
    %v300 = vunpack.c.h.b16 %v92
    %v301 = vunpack.c.l.b16 %v93
    %v302 = vunpack.c.h.b16 %v93
    %v303 = vunpack.c.l.b16 %v94
    %v304 = vunpack.c.h.b16 %v94
    %v305 = vunpack.c.l.b16 %v95
    %v306 = vunpack.c.h.b16 %v95
    %v307 = vunpack.c.l.b16 %v96
    %v308 = vunpack.c.h.b16 %v96
    %v309 = vunpack.c.l.b16 %v97
    %v310 = vunpack.c.h.b16 %v97
    %v311 = vunpack.c.l.b16 %v98
    %v312 = vunpack.c.h.b16 %v98
    %v313 = vunpack.c.l.b16 %v99
    %v314 = vunpack.c.h.b16 %v99
    %v315 = vunpack.c.l.b16 %v100
    %v316 = vunpack.c.h.b16 %v100
    %v317 = vunpack.c.l.b16 %v101
    %v318 = vunpack.c.h.b16 %v101
    %v319 = vunpack.c.l.b16 %v102
    %v320 = vunpack.c.h.b16 %v102
    %v321 = vunpack.c.l.b16 %v103
    %v322 = vunpack.c.h.b16 %v103
    %v323 = vunpack.c.l.b16 %v104
    %v324 = vunpack.c.h.b16 %v104
    %v325 = vunpack.c.l.b16 %v105
    %v326 = vunpack.c.h.b16 %v105
    %v327 = vunpack.c.l.b16 %v106
    %v328 = vunpack.c.h.b16 %v106
    %v329 = vunpack.c.l.b16 %v107
    %v330 = vunpack.c.h.b16 %v107
    %v331 = vunpack.c.l.b16 %v108
    %v332 = vunpack.c.h.b16 %v108
    %v333 = vpack.c.b16 %v209, %v205
    %v334 = vpack.c.b16 %v210, %v206
    %v335 = vpack.c.b16 %v211, %v207
    %v336 = vpack.c.b16 %v212, %v208
    %v337 = vpack.c.b16 %v217, %v213
    %v338 = vpack.c.b16 %v218, %v214
    %v339 = vpack.c.b16 %v219, %v215
    %v340 = vpack.c.b16 %v220, %v216
    %v341 = vpack.c.b16 %v225, %v221
    %v342 = vpack.c.b16 %v226, %v222
    %v343 = vpack.c.b16 %v227, %v223
    %v344 = vpack.c.b16 %v228, %v224
    %v345 = vpack.c.b16 %v233, %v229
    %v346 = vpack.c.b16 %v234, %v230
    %v347 = vpack.c.b16 %v235, %v231
    %v348 = vpack.c.b16 %v236, %v232
    %v349 = vpack.c.b16 %v241, %v237
    %v350 = vpack.c.b16 %v242, %v238
    %v351 = vpack.c.b16 %v243, %v239
    %v352 = vpack.c.b16 %v244, %v240
    %v353 = vpack.c.b16 %v249, %v245
    %v354 = vpack.c.b16 %v250, %v246
    %v355 = vpack.c.b16 %v251, %v247
    %v356 = vpack.c.b16 %v252, %v248
    %v357 = vpack.c.b16 %v257, %v253
    %v358 = vpack.c.b16 %v258, %v254
    %v359 = vpack.c.b16 %v259, %v255
    %v360 = vpack.c.b16 %v260, %v256
    %v361 = vpack.c.b16 %v265, %v261
    %v362 = vpack.c.b16 %v266, %v262
    %v363 = vpack.c.b16 %v267, %v263
    %v364 = vpack.c.b16 %v268, %v264
    %v365 = vpack.c.b16 %v273, %v269
    %v366 = vpack.c.b16 %v274, %v270
    %v367 = vpack.c.b16 %v275, %v271
    %v368 = vpack.c.b16 %v276, %v272
    %v369 = vpack.c.b16 %v281, %v277
    %v370 = vpack.c.b16 %v282, %v278
    %v371 = vpack.c.b16 %v283, %v279
    %v372 = vpack.c.b16 %v284, %v280
    %v373 = vpack.c.b16 %v289, %v285
    %v374 = vpack.c.b16 %v290, %v286
    %v375 = vpack.c.b16 %v291, %v287
    %v376 = vpack.c.b16 %v292, %v288
    %v377 = vpack.c.b16 %v297, %v293
    %v378 = vpack.c.b16 %v298, %v294
    %v379 = vpack.c.b16 %v299, %v295
    %v380 = vpack.c.b16 %v300, %v296
    %v381 = vpack.c.b16 %v305, %v301
    %v382 = vpack.c.b16 %v306, %v302
    %v383 = vpack.c.b16 %v307, %v303
    %v384 = vpack.c.b16 %v308, %v304
    %v385 = vpack.c.b16 %v313, %v309
    %v386 = vpack.c.b16 %v314, %v310
    %v387 = vpack.c.b16 %v315, %v311
    %v388 = vpack.c.b16 %v316, %v312
    %v389 = vpack.c.b16 %v321, %v317
    %v390 = vpack.c.b16 %v322, %v318
    %v391 = vpack.c.b16 %v323, %v319
    %v392 = vpack.c.b16 %v324, %v320
    %v393 = vpack.c.b16 %v329, %v325
    %v394 = vpack.c.b16 %v330, %v326
    %v395 = vpack.c.b16 %v331, %v327
    %v396 = vpack.c.b16 %v332, %v328
    %461 = vmatprep.subr.bf16.mxu0 %v334
    %462 = vmatpush1.bf16.msra.mxu0 %v333
    %463 = vmatprep.subr.bf16.mxu0 %v338
    %464 = vmatpush1.bf16.msra.mxu0 %v337
    %465 = vmatprep.subr.bf16.mxu0 %v342
    %466 = vmatpush1.bf16.msra.mxu0 %v341
    %467 = vmatprep.subr.bf16.mxu0 %v346
    %468 = vmatpush1.bf16.msra.mxu0 %v345
    %469 = vmatprep.subr.bf16.mxu0 %v350
    %470 = vmatpush1.bf16.msra.mxu0 %v349
    %471 = vmatprep.subr.bf16.mxu0 %v354
    %472 = vmatpush1.bf16.msra.mxu0 %v353
    %473 = vmatprep.subr.bf16.mxu0 %v358
    %474 = vmatpush1.bf16.msra.mxu0 %v357
    %475 = vmatprep.subr.bf16.mxu0 %v362
    %476 = vmatpush1.bf16.msra.mxu0 %v361
    %477 = vmatprep.subr.bf16.mxu0 %v366
    %478 = vmatpush1.bf16.msra.mxu0 %v365
    %479 = vmatprep.subr.bf16.mxu0 %v370
    %480 = vmatpush1.bf16.msra.mxu0 %v369
    %481 = vmatprep.subr.bf16.mxu0 %v374
    %482 = vmatpush1.bf16.msra.mxu0 %v373
    %483 = vmatprep.subr.bf16.mxu0 %v378
    %484 = vmatpush1.bf16.msra.mxu0 %v377
    %485 = vmatprep.subr.bf16.mxu0 %v382
    %486 = vmatpush1.bf16.msra.mxu0 %v381
    %487 = vmatprep.subr.bf16.mxu0 %v386
    %488 = vmatpush1.bf16.msra.mxu0 %v385
    %489 = vmatprep.subr.bf16.mxu0 %v390
    %490 = vmatpush1.bf16.msra.mxu0 %v389
    %491 = vmatprep.subr.bf16.mxu0 %v394
    %492 = vmatpush1.bf16.msra.mxu0 %v393
    %493 = vmatprep.mubr.bf16.mxu0 %v138
    %494 = vmatmul.mubr.bf16.gmra.mrb[0].mxu0 %v137
    %v495 = vpop.f32.mrb[0].mxu0
    %v496 = vadd.f32 %v114, %v495
    %v497 = vpop.f32.mrb[0].mxu0
    %v498 = vadd.f32 %v118, %v497
    %v499 = vpop.f32.mrb[0].mxu0
    %v500 = vadd.f32 %v114, %v499
    %v501 = vpop.f32.mrb[0].mxu0
    %v502 = vadd.f32 %v118, %v501
    %503 = vdwg.mxu0
    %504 = vmatprep.subr.bf16.mxu0 %v336
    %505 = vmatpush1.bf16.msra.mxu0 %v335
    %506 = vmatprep.subr.bf16.mxu0 %v340
    %507 = vmatpush1.bf16.msra.mxu0 %v339
    %508 = vmatprep.subr.bf16.mxu0 %v344
    %509 = vmatpush1.bf16.msra.mxu0 %v343
    %510 = vmatprep.subr.bf16.mxu0 %v348
    %511 = vmatpush1.bf16.msra.mxu0 %v347
    %512 = vmatprep.subr.bf16.mxu0 %v352
    %513 = vmatpush1.bf16.msra.mxu0 %v351
    %514 = vmatprep.subr.bf16.mxu0 %v356
    %515 = vmatpush1.bf16.msra.mxu0 %v355
    %516 = vmatprep.subr.bf16.mxu0 %v360
    %517 = vmatpush1.bf16.msra.mxu0 %v359
    %518 = vmatprep.subr.bf16.mxu0 %v364
    %519 = vmatpush1.bf16.msra.mxu0 %v363
    %520 = vmatprep.subr.bf16.mxu0 %v368
    %521 = vmatpush1.bf16.msra.mxu0 %v367
    %522 = vmatprep.subr.bf16.mxu0 %v372
    %523 = vmatpush1.bf16.msra.mxu0 %v371
    %524 = vmatprep.subr.bf16.mxu0 %v376
    %525 = vmatpush1.bf16.msra.mxu0 %v375
    %526 = vmatprep.subr.bf16.mxu0 %v380
    %527 = vmatpush1.bf16.msra.mxu0 %v379
    %528 = vmatprep.subr.bf16.mxu0 %v384
    %529 = vmatpush1.bf16.msra.mxu0 %v383
    %530 = vmatprep.subr.bf16.mxu0 %v388
    %531 = vmatpush1.bf16.msra.mxu0 %v387
    %532 = vmatprep.subr.bf16.mxu0 %v392
    %533 = vmatpush1.bf16.msra.mxu0 %v391
    %534 = vmatprep.subr.bf16.mxu0 %v396
    %535 = vmatpush1.bf16.msra.mxu0 %v395
    %536 = vmatprep.mubr.bf16.mxu0 %v138
    %537 = vmatmul.mubr.bf16.gmra.mrb[0].mxu0 %v137
    %v538 = vpop.f32.mrb[0].mxu0
    %v539 = vadd.f32 %v122, %v538
    %v540 = vpop.f32.mrb[0].mxu0
    %v541 = vadd.f32 %v126, %v540
    %v542 = vpop.f32.mrb[0].mxu0
    %v543 = vadd.f32 %v122, %v542
    %v544 = vpop.f32.mrb[0].mxu0
    %v545 = vadd.f32 %v126, %v544
    %546 = vdwg.mxu0
    %547 = vst [vmem:[#allocation7] sm:$0xff] %v496
    %548 = vst [vmem:[#allocation7 + $0x8] sm:$0xff] %v498
    %549 = vst [vmem:[#allocation7 + $0x10] sm:$0xff] %v539
    %550 = vst [vmem:[#allocation7 + $0x18] sm:$0xff] %v541
    %551 = vst [vmem:[#allocation7 + $0x20] sm:$0xff] %v500
    %552 = vst [vmem:[#allocation7 + $0x28] sm:$0xff] %v502
    %553 = vst [vmem:[#allocation7 + $0x30] sm:$0xff] %v543
    %554 = vst [vmem:[#allocation7 + $0x38] sm:$0xff] %v545
    // Predicated region
    $region22: #{tpu_custom_call.1} parent=1 // pred_check
      _
    $region23: #{tpu_custom_call.1} parent=1 // pred_check_branch
      %556 = sbr.rel (0) target = $region25
    $region24: #{tpu_custom_call.1} parent=1 // pred_region
      %s558 = ssub.s32 1024, 512
      %559 = vsyncadd [#allocation4], %s558
      %s560 = sshll.u32 [#allocation7], 4
      %s561 = int_to_ptr.vmem [resolvable:$true] %s560
      %566 = dma.vmem_to_hbm [thread:$0]  %s561, 512, %s3, [#allocation4], 512, 512, 32
    $region25: #{tpu_custom_call.1} parent=1 // pred_fallthru
      _
    // Predicated region
    $region26: #{tpu_custom_call.1} parent=1 // pred_check
      _
    $region27: #{tpu_custom_call.1} parent=1 // pred_check_branch
      %568 = sbr.rel (0) target = $region29
    $region28: #{tpu_custom_call.1} parent=1 // pred_region
      %569 = dma.done [#allocation4], 1024
    $region29: #{tpu_custom_call.1} parent=1 // pred_fallthru
      _
    %570 = vsyncpa [#allocation3], 1
    %571 = vsyncpa [#allocation6], 1
    %572 = vsyncpa [#allocation4], 1

</llo_original>
